<compile_context>
chip_gen: v7x
topology: tpu7x:2x2x1
jax: 0.10.0
libtpu: 0.0.40
codegen_flags: <defaults>
</compile_context>

<pallas_src>
import math

import jax
import jax.numpy as jnp
from jax.experimental import pallas as pl
from jax.experimental.pallas import tpu as pltpu


def _prelu_kernel(alpha_ref, x_ref, o_ref):
    # alpha_ref: (1, L) resident in VMEM; x_ref/o_ref: (row_block, L) tiles.
    x = x_ref[...]
    a = alpha_ref[...]                      # broadcasts over rows
    o_ref[...] = jnp.where(x > 0, x, a * x).astype(o_ref.dtype)


def prelu_pallas(x, alpha, *, target_tile_bytes=2 * 1024 * 1024):
    """PRelu forward. x: [..., size] with size == alpha.shape[0]."""
    size = alpha.shape[0]
    assert x.shape[-1] == size, "alpha must broadcast against the last axis of x"
    orig_shape = x.shape
    orig_dtype = x.dtype
    total = x.size

    # ---- choose a lane-dense row length L (multiple of size, ideally of 128) ----
    if size % 128 == 0:
        L = size
    else:
        lcm = (size * 128) // math.gcd(size, 128)
        # only pack when the resulting row stays modest; otherwise keep L = size
        L = lcm if lcm <= 8192 else size

    flat = x.reshape(-1)
    pad = (-total) % L
    if pad:
        flat = jnp.pad(flat, (0, pad))
    rows = flat.shape[0] // L
    x2d = flat.reshape(rows, L)

    # alpha repeats with period `size` along the flattened feature axis.
    alpha_row = jnp.tile(alpha, L // size).reshape(1, L)

    # ---- row tile: ~target_tile_bytes per buffer, aligned to sublane packing ----
    dt_bytes = jnp.dtype(orig_dtype).itemsize
    sublane = max(8, 32 // dt_bytes)        # 8 for f32, 16 for bf16, 32 for int8
    row_block = max(sublane, target_tile_bytes // (L * dt_bytes))
    row_block = (row_block // sublane) * sublane
    if row_block >= rows:
        row_block = rows                    # single block == full array dims (allowed)
    grid = (pl.cdiv(rows, row_block),)

    out2d = pl.pallas_call(
        _prelu_kernel,
        out_shape=jax.ShapeDtypeStruct((rows, L), orig_dtype),
        grid_spec=pltpu.PrefetchScalarGridSpec(
            num_scalar_prefetch=0,
            grid=grid,
            in_specs=[
                pl.BlockSpec((1, L), lambda i: (0, 0)),          # alpha (resident)
                pl.BlockSpec((row_block, L), lambda i: (i, 0)),  # x tile
            ],
            out_specs=pl.BlockSpec((row_block, L), lambda i: (i, 0)),
        ),
        compiler_params=pltpu.CompilerParams(
            dimension_semantics=("parallel",),        # megacore-shardable row axis
            vmem_limit_bytes=48 * 1024 * 1024,        # tiles use ~8 MiB double-buffered
        ),
    )(alpha_row, x2d)

    out_flat = out2d.reshape(-1)
    if pad:
        out_flat = out_flat[:total]
    return out_flat.reshape(orig_shape)


def prelu_ref(x, alpha):
    pos = jnp.maximum(x, 0.0)
    neg = alpha * (x - jnp.abs(x)) * 0.5
    return pos + neg


if __name__ == "__main__":
    key = jax.random.PRNGKey(0)
    size = 32
    # x: [batch, seq, hidden] = [2, 8, 32], feature-last layout
    x = jax.random.normal(key, (2, 8, size), dtype=jnp.float32)

    # Module __init__ initializes alpha = zeros((size,)) (PRelu degenerates to ReLU)
    alpha = jnp.zeros((size,), dtype=jnp.float32)
    out = prelu_pallas(x, alpha)
    jax.block_until_ready(out)
    assert out.shape == x.shape and out.dtype == x.dtype
    assert jnp.allclose(out, prelu_ref(x, alpha), atol=1e-6)

    # Nonzero alpha to exercise the negative-slope path.
    alpha_nz = jnp.linspace(-0.5, 0.5, size, dtype=jnp.float32)
    out_nz = prelu_pallas(x, alpha_nz)
    jax.block_until_ready(out_nz)
    assert jnp.allclose(out_nz, prelu_ref(x, alpha_nz), atol=1e-6)

    # Non-divisible leading shape: exercises padding + ragged multi-step grid.
    x_odd = jax.random.normal(jax.random.PRNGKey(1), (3, 7, 5, size), dtype=jnp.float32)
    out_odd = prelu_pallas(x_odd, alpha_nz, target_tile_bytes=4096)
    jax.block_until_ready(out_odd)
    assert jnp.allclose(out_odd, prelu_ref(x_odd, alpha_nz), atol=1e-6)

    print("KERNEL_OK")
</pallas_src>

<mosaic_0001>
module attributes {stable_mosaic.version = 11 : i64} {
  func.func @_prelu_kernel(%arg0: i32, %arg1: memref<1x128xf32, #tpu.memory_space<vmem>>, %arg2: memref<4x128xf32, #tpu.memory_space<vmem>>, %arg3: memref<4x128xf32, #tpu.memory_space<vmem>>) attributes {dimension_semantics = [#tpu.dimension_semantics<parallel>], iteration_bounds = array<i64: 1>, scalar_prefetch = 0 : i64, scratch_operands = 0 : i64, tpu.core_type = #tpu.core_type<tc>, window_params = [{pipeline_mode = #tpu.pipeline_mode<synchronous>, transform_indices = @transform_0, window_bounds = array<i64: 1, 128>}, {transform_indices = @transform_1, window_bounds = array<i64: 4, 128>}, {transform_indices = @transform_2, window_bounds = array<i64: 4, 128>}]} {
    %c0 = arith.constant 0 : index
    %c0_0 = arith.constant 0 : index
    %0 = vector.load %arg2[%c0, %c0_0] : memref<4x128xf32, #tpu.memory_space<vmem>>, vector<4x128xf32>
    %c0_1 = arith.constant 0 : index
    %c0_2 = arith.constant 0 : index
    %1 = vector.load %arg1[%c0_1, %c0_2] : memref<1x128xf32, #tpu.memory_space<vmem>>, vector<1x128xf32>
    %cst = arith.constant 0.000000e+00 : f32
    %2 = vector.broadcast %cst : f32 to vector<4x128xf32>
    %3 = arith.cmpf ogt, %0, %2 : vector<4x128xf32>
    %4 = vector.broadcast %1 : vector<1x128xf32> to vector<4x128xf32>
    %5 = arith.mulf %4, %0 : vector<4x128xf32>
    %6 = arith.select %3, %0, %5 : vector<4x128xi1>, vector<4x128xf32>
    %c0_3 = arith.constant 0 : index
    %c0_4 = arith.constant 0 : index
    %7 = vector.load %arg3[%c0_3, %c0_4] : memref<4x128xf32, #tpu.memory_space<vmem>>, vector<4x128xf32>
    tpu.vector_store %arg3[%c0_3, %c0_4], %6 {strides = array<i32>} : memref<4x128xf32, #tpu.memory_space<vmem>>, vector<4x128xf32>,
    return
  }
  func.func @transform_0(%arg0: i32) -> (i32, i32) {
    %c0_i32 = arith.constant 0 : i32
    %c0_i32_0 = arith.constant 0 : i32
    %c0_i32_1 = arith.constant 0 : i32
    return %c0_i32, %c0_i32_0 : i32, i32
  }
  func.func @transform_1(%arg0: i32) -> (i32, i32) {
    %c0_i32 = arith.constant 0 : i32
    %c0_i32_0 = arith.constant 0 : i32
    return %arg0, %c0_i32 : i32, i32
  }
  func.func @transform_2(%arg0: i32) -> (i32, i32) {
    %c0_i32 = arith.constant 0 : i32
    %c0_i32_0 = arith.constant 0 : i32
    return %arg0, %c0_i32 : i32, i32
  }
}

</mosaic_0001>

<llo_original>
// kernel: tpu_custom_call.1
$region0: #{tpu_custom_call.1}
  #allocation0 [shape = 'u32[]', space=smem, size = 0x4, offset = 0x4, fixed_abs, tag = 'smem constant byte address 0x4 - core index']
  #allocation1 [shape = 'u32[144,128]{1,0:T(1,128)}', space=vmem, size = 0x12000, scoped, tag = 'internal scratch']
  %s0 = inlined_call_operand.hbm [shape: f32[1,128], index: 0, kind: input, shape index: {}]
  %s1 = inlined_call_operand.hbm [shape: f32[4,128], index: 1, kind: input, shape index: {}]
  %s2 = inlined_call_operand.hbm [shape: f32[4,128], index: 2, kind: output, shape index: {}]
  %s3 = sld [smem:[#allocation0]]
  $region26: #{tpu_custom_call.1} parent=0
    _
  %s5 = ssub.s32 1, %s3
  %s6 = scalar_select 0, %s5, %s3
  $region1: #{tpu_custom_call.1} parent=0
    #allocation2 [shape = 'u8[512]{0}', space=vmem, size = 0x400, scoped, tag = 'input window, operand 0, single buffered']
    #allocation3 [shape = 's32[1]{0}', space=sflag, size = 0x4, scoped, tag = 'scoped memory for tpu_custom_call.1']
    #allocation4 [shape = 's32[1]{0}', space=sflag, size = 0x4, scoped, tag = 'scoped memory for tpu_custom_call.1']
    #allocation5 [shape = 'u8[2048]{0}', space=vmem, size = 0x800, scoped, tag = 'input window, operand 1, single buffered']
    #allocation6 [shape = 's32[1]{0}', space=sflag, size = 0x4, scoped, tag = 'scoped memory for tpu_custom_call.1']
    #allocation7 [shape = 'u8[2048]{0}', space=vmem, size = 0x800, scoped, tag = 'output window, operand 0, single buffered']
    %7 = vsyncpa [#allocation3], 0
    %8 = vsyncpa [#allocation6], 0
    %9 = vsyncpa [#allocation4], 0
    // Predicated region
    $region2: #{tpu_custom_call.1} parent=1 // pred_check
      _
    $region3: #{tpu_custom_call.1} parent=1 // pred_check_branch
      %11 = sbr.rel (0) target = $region5
    $region4: #{tpu_custom_call.1} parent=1 // pred_region
      %s13 = ssub.s32 16, 16
      %14 = vsyncadd [#allocation3], %s13
      %s16 = sshll.u32 [#allocation2], 4
      %s17 = int_to_ptr.vmem [resolvable:$true] %s16
      %19 = dma.hbm_to_vmem [thread:$0]  %s0, 16, %s17, [#allocation3]
    $region5: #{tpu_custom_call.1} parent=1 // pred_fallthru
      _
    // Predicated region
    $region6: #{tpu_custom_call.1} parent=1 // pred_check
      _
    $region7: #{tpu_custom_call.1} parent=1 // pred_check_branch
      %21 = sbr.rel (0) target = $region9
    $region8: #{tpu_custom_call.1} parent=1 // pred_region
      %s23 = ssub.s32 64, 64
      %24 = vsyncadd [#allocation6], %s23
      %s26 = sshll.u32 [#allocation5], 4
      %s27 = int_to_ptr.vmem [resolvable:$true] %s26
      %29 = dma.hbm_to_vmem [thread:$0]  %s1, 64, %s27, [#allocation6]
    $region9: #{tpu_custom_call.1} parent=1 // pred_fallthru
      _
    // Predicated region
    $region10: #{tpu_custom_call.1} parent=1 // pred_check
      _
    $region11: #{tpu_custom_call.1} parent=1 // pred_check_branch
      %31 = sbr.rel (0) target = $region13
    $region12: #{tpu_custom_call.1} parent=1 // pred_region
      %32 = dma.done [#allocation3], 16
    $region13: #{tpu_custom_call.1} parent=1 // pred_fallthru
      _
    // Predicated region
    $region14: #{tpu_custom_call.1} parent=1 // pred_check
      _
    $region15: #{tpu_custom_call.1} parent=1 // pred_check_branch
      %34 = sbr.rel (0) target = $region17
    $region16: #{tpu_custom_call.1} parent=1 // pred_region
      %35 = dma.done [#allocation6], 64
    $region17: #{tpu_custom_call.1} parent=1 // pred_fallthru
      _
    %v36 = vld [vmem:[#allocation5] sm:$0xf]
    %v37 = vld [vmem:[#allocation2] sm:$0x1]
    %vm38 = vcmp.gt.f32.partialorder %v36, 0.0
    %v40 = vlaneseq
    %v41 = vshrl.u32 %v40, 7
    %v42 = vsub.s32 0, %v41
    %v43 = vrot.slane %v37, %v42
    %v45 = vmul.f32 %v43, %v36
    %v46 = vsel %vm38, %v36, %v45
    %47 = vst [vmem:[#allocation7] sm:$0xf] %v46
    // Predicated region
    $region18: #{tpu_custom_call.1} parent=1 // pred_check
      _
    $region19: #{tpu_custom_call.1} parent=1 // pred_check_branch
      %49 = sbr.rel (0) target = $region21
    $region20: #{tpu_custom_call.1} parent=1 // pred_region
      %s51 = ssub.s32 64, 64
      %52 = vsyncadd [#allocation4], %s51
      %s54 = sshll.u32 [#allocation7], 4
      %s55 = int_to_ptr.vmem [resolvable:$true] %s54
      %57 = dma.vmem_to_hbm [thread:$0]  %s55, 64, %s2, [#allocation4]
    $region21: #{tpu_custom_call.1} parent=1 // pred_fallthru
      _
    // Predicated region
    $region22: #{tpu_custom_call.1} parent=1 // pred_check
      _
    $region23: #{tpu_custom_call.1} parent=1 // pred_check_branch
      %59 = sbr.rel (0) target = $region25
    $region24: #{tpu_custom_call.1} parent=1 // pred_region
      %60 = dma.done [#allocation4], 64
    $region25: #{tpu_custom_call.1} parent=1 // pred_fallthru
      _
    %61 = vsyncpa [#allocation3], 1
    %62 = vsyncpa [#allocation6], 1
    %63 = vsyncpa [#allocation4], 1

</llo_original>
